<compile_context>
chip_gen: v6e
topology: v6e:2x2x1
jax: 0.10.0
libtpu: 0.0.40
codegen_flags: <defaults>
</compile_context>

<pallas_src>
import jax
import jax.numpy as jnp
from jax.experimental import pallas as pl
from jax.experimental.pallas import tpu as pltpu


def nam_kernel(x_ref, w1_ref, b1_ref, w2_ref, b2_ref, sfeat_ref, sbias_ref,
               out_ref, partial_ref):
    # Hoisted transcendentals: two full (F, H) exp passes on the EUP.
    ew1 = jnp.exp(w1_ref[...])                      # (F, H)
    ew2 = jnp.exp(w2_ref[...])                      # (F, H)

    xc = x_ref[...] - b1_ref[...]                   # (TB, F) - (1, F) -> (TB, F)

    # ExU(1, H) for all features at once -> (TB, F, H)
    h = jnp.maximum(xc[:, :, None] * ew1[None, :, :], 0.0)

    # ExU(H, 1): bias-subtract, scale, reduce over H (lane axis), relu.
    z = (h - b2_ref[...][None, :, :]) * ew2[None, :, :]
    y = jnp.maximum(jnp.sum(z, axis=2), 0.0)        # (TB, F)

    partial = y * sfeat_ref[...]                    # (TB, F) * (1, F)
    partial_ref[...] = partial                      # single dense store
    out_ref[...] = jnp.sum(partial, axis=1, keepdims=True) + sbias_ref[0]


def nam_forward(x, w1, b1, w2, b2, s, *, block_b=128):
    """x: (B, F); w1, w2, b2: (F, H); b1: (1, F); s: (1, F+1).

    Returns (output (B,), partial_output (B, F)).
    """
    B, F = x.shape
    H = w1.shape[1]
    TB = min(B, block_b)
    assert B % TB == 0, "batch must be divisible by the batch tile"
    grid = (B // TB,)

    s_feat = s[:, :F]          # (1, F)   per-feature summation weights
    s_bias = s[0, F:]          # (1,)     final additive bias -> SMEM scalar

    out, partial = pl.pallas_call(
        nam_kernel,
        out_shape=(jax.ShapeDtypeStruct((B, 1), jnp.float32),
                   jax.ShapeDtypeStruct((B, F), jnp.float32)),
        grid=grid,
        in_specs=[
            pl.BlockSpec((TB, F), lambda i: (i, 0)),   # x (batch-tiled)
            pl.BlockSpec((F, H), lambda i: (0, 0)),    # w1
            pl.BlockSpec((1, F), lambda i: (0, 0)),    # b1
            pl.BlockSpec((F, H), lambda i: (0, 0)),    # w2
            pl.BlockSpec((F, H), lambda i: (0, 0)),    # b2
            pl.BlockSpec((1, F), lambda i: (0, 0)),    # summation weights
            pl.BlockSpec(memory_space=pltpu.MemorySpace.SMEM),  # scalar bias
        ],
        out_specs=(
            pl.BlockSpec((TB, 1), lambda i: (i, 0)),   # out
            pl.BlockSpec((TB, F), lambda i: (i, 0)),   # partial
        ),
        compiler_params=pltpu.CompilerParams(
            dimension_semantics=("parallel",)),
    )(x, w1, b1, w2, b2, s_feat, s_bias)
    return out[:, 0], partial


if __name__ == "__main__":
    B, F, H = 8, 4, 128   # batch, in_dim (num features), feature_hidden_dim

    key = jax.random.PRNGKey(0)
    kx, kw1, kb1, kw2, kb2, ks = jax.random.split(key, 6)

    # Deterministic parameter init mirroring the PyTorch module's reset_parameters:
    # ExU weights/biases ~ N(3.5, 0.5), summation params ~ N(0.5, 0.5).
    x = jax.random.normal(kx, (B, F), jnp.float32)
    w1 = 3.5 + 0.5 * jax.random.normal(kw1, (F, H), jnp.float32)  # ExU(1,H).weight[:,0]
    b1 = 3.5 + 0.5 * jax.random.normal(kb1, (1, F), jnp.float32)  # ExU(1,H).bias
    w2 = 3.5 + 0.5 * jax.random.normal(kw2, (F, H), jnp.float32)  # ExU(H,1).weight[0,:]
    b2 = 3.5 + 0.5 * jax.random.normal(kb2, (F, H), jnp.float32)  # ExU(H,1).bias
    s = 0.5 + 0.5 * jax.random.normal(ks, (1, F + 1), jnp.float32)  # summation_params

    out, partial = nam_forward(x, w1, b1, w2, b2, s)
    jax.block_until_ready((out, partial))

    # Pure-JAX reference check (same math, vectorized).
    ew1 = jnp.exp(w1)
    ew2 = jnp.exp(w2)
    h_ref = jnp.maximum((x - b1)[:, :, None] * ew1[None, :, :], 0.0)
    y_ref = jnp.maximum(((h_ref - b2[None]) * ew2[None]).sum(-1), 0.0)
    ref_partial = y_ref * s[:, :F]
    ref_out = ref_partial.sum(axis=1) + s[0, F]
    assert jnp.allclose(partial, ref_partial, rtol=1e-5, atol=1e-3)
    assert jnp.allclose(out, ref_out, rtol=1e-5, atol=1e-3)

    print("KERNEL_OK")
</pallas_src>

<mosaic_0001>
module attributes {stable_mosaic.version = 11 : i64} {
  func.func @nam_kernel(%arg0: i32, %arg1: memref<8x4xf32, #tpu.memory_space<vmem>>, %arg2: memref<4x128xf32, #tpu.memory_space<vmem>>, %arg3: memref<1x4xf32, #tpu.memory_space<vmem>>, %arg4: memref<4x128xf32, #tpu.memory_space<vmem>>, %arg5: memref<4x128xf32, #tpu.memory_space<vmem>>, %arg6: memref<1x4xf32, #tpu.memory_space<vmem>>, %arg7: memref<1xf32, #tpu.memory_space<smem>>, %arg8: memref<8x1xf32, #tpu.memory_space<vmem>>, %arg9: memref<8x4xf32, #tpu.memory_space<vmem>>) attributes {dimension_semantics = [#tpu.dimension_semantics<parallel>], iteration_bounds = array<i64: 1>, scalar_prefetch = 0 : i64, scratch_operands = 0 : i64, tpu.core_type = #tpu.core_type<tc>, window_params = [{transform_indices = @transform_0, window_bounds = array<i64: 8, 4>}, {pipeline_mode = #tpu.pipeline_mode<synchronous>, transform_indices = @transform_1, window_bounds = array<i64: 4, 128>}, {pipeline_mode = #tpu.pipeline_mode<synchronous>, transform_indices = @transform_2, window_bounds = array<i64: 1, 4>}, {pipeline_mode = #tpu.pipeline_mode<synchronous>, transform_indices = @transform_3, window_bounds = array<i64: 4, 128>}, {pipeline_mode = #tpu.pipeline_mode<synchronous>, transform_indices = @transform_4, window_bounds = array<i64: 4, 128>}, {pipeline_mode = #tpu.pipeline_mode<synchronous>, transform_indices = @transform_5, window_bounds = array<i64: 1, 4>}, {transform_indices = @transform_6, window_bounds = array<i64: 1>}, {transform_indices = @transform_7, window_bounds = array<i64: 8, 1>}, {transform_indices = @transform_8, window_bounds = array<i64: 8, 4>}]} {
    %c0 = arith.constant 0 : index
    %c0_0 = arith.constant 0 : index
    %0 = vector.load %arg2[%c0, %c0_0] : memref<4x128xf32, #tpu.memory_space<vmem>>, vector<4x128xf32>
    %1 = math.exp %0 : vector<4x128xf32>
    %c0_1 = arith.constant 0 : index
    %c0_2 = arith.constant 0 : index
    %2 = vector.load %arg4[%c0_1, %c0_2] : memref<4x128xf32, #tpu.memory_space<vmem>>, vector<4x128xf32>
    %3 = math.exp %2 : vector<4x128xf32>
    %c0_3 = arith.constant 0 : index
    %c0_4 = arith.constant 0 : index
    %4 = vector.load %arg1[%c0_3, %c0_4] : memref<8x4xf32, #tpu.memory_space<vmem>>, vector<8x4xf32>
    %c0_5 = arith.constant 0 : index
    %c0_6 = arith.constant 0 : index
    %5 = vector.load %arg3[%c0_5, %c0_6] : memref<1x4xf32, #tpu.memory_space<vmem>>, vector<1x4xf32>
    %6 = vector.broadcast %5 : vector<1x4xf32> to vector<8x4xf32>
    %7 = arith.subf %4, %6 : vector<8x4xf32>
    %8 = vector.shape_cast %7 : vector<8x4xf32> to vector<8x4x1xf32>
    %9 = vector.shape_cast %1 : vector<4x128xf32> to vector<1x4x128xf32>
    %10 = vector.broadcast %8 : vector<8x4x1xf32> to vector<8x4x128xf32>
    %11 = vector.broadcast %9 : vector<1x4x128xf32> to vector<8x4x128xf32>
    %12 = arith.mulf %10, %11 : vector<8x4x128xf32>
    %cst = arith.constant 0.000000e+00 : f32
    %13 = vector.broadcast %cst : f32 to vector<8x4x128xf32>
    %14 = arith.maximumf %12, %13 : vector<8x4x128xf32>
    %c0_7 = arith.constant 0 : index
    %c0_8 = arith.constant 0 : index
    %15 = vector.load %arg5[%c0_7, %c0_8] : memref<4x128xf32, #tpu.memory_space<vmem>>, vector<4x128xf32>
    %16 = vector.shape_cast %15 : vector<4x128xf32> to vector<1x4x128xf32>
    %17 = vector.broadcast %16 : vector<1x4x128xf32> to vector<8x4x128xf32>
    %18 = arith.subf %14, %17 : vector<8x4x128xf32>
    %19 = vector.shape_cast %3 : vector<4x128xf32> to vector<1x4x128xf32>
    %20 = vector.broadcast %19 : vector<1x4x128xf32> to vector<8x4x128xf32>
    %21 = arith.mulf %18, %20 : vector<8x4x128xf32>
    %cst_9 = arith.constant dense<0.000000e+00> : vector<8x4xf32>
    %22 = vector.multi_reduction <add>, %21, %cst_9 [2] : vector<8x4x128xf32> to vector<8x4xf32>
    %cst_10 = arith.constant 0.000000e+00 : f32
    %23 = vector.broadcast %cst_10 : f32 to vector<8x4xf32>
    %24 = arith.maximumf %22, %23 : vector<8x4xf32>
    %c0_11 = arith.constant 0 : index
    %c0_12 = arith.constant 0 : index
    %25 = vector.load %arg6[%c0_11, %c0_12] : memref<1x4xf32, #tpu.memory_space<vmem>>, vector<1x4xf32>
    %26 = vector.broadcast %25 : vector<1x4xf32> to vector<8x4xf32>
    %27 = arith.mulf %24, %26 : vector<8x4xf32>
    %c0_13 = arith.constant 0 : index
    %c0_14 = arith.constant 0 : index
    %28 = vector.load %arg9[%c0_13, %c0_14] : memref<8x4xf32, #tpu.memory_space<vmem>>, vector<8x4xf32>
    tpu.vector_store %arg9[%c0_13, %c0_14], %27 {strides = array<i32>} : memref<8x4xf32, #tpu.memory_space<vmem>>, vector<8x4xf32>,
    %cst_15 = arith.constant dense<0.000000e+00> : vector<8xf32>
    %29 = vector.multi_reduction <add>, %27, %cst_15 [1] : vector<8x4xf32> to vector<8xf32>
    %30 = vector.shape_cast %29 : vector<8xf32> to vector<8x1xf32>
    %c0_16 = arith.constant 0 : index
    %31 = memref.load %arg7[%c0_16] : memref<1xf32, #tpu.memory_space<smem>>
    %32 = vector.broadcast %31 : f32 to vector<8x1xf32>
    %33 = arith.addf %30, %32 : vector<8x1xf32>
    %c0_17 = arith.constant 0 : index
    %c0_18 = arith.constant 0 : index
    %34 = vector.load %arg8[%c0_17, %c0_18] : memref<8x1xf32, #tpu.memory_space<vmem>>, vector<8x1xf32>
    tpu.vector_store %arg8[%c0_17, %c0_18], %33 {strides = array<i32>} : memref<8x1xf32, #tpu.memory_space<vmem>>, vector<8x1xf32>,
    return
  }
  func.func @transform_0(%arg0: i32) -> (i32, i32) {
    %c0_i32 = arith.constant 0 : i32
    %c0_i32_0 = arith.constant 0 : i32
    return %arg0, %c0_i32 : i32, i32
  }
  func.func @transform_1(%arg0: i32) -> (i32, i32) {
    %c0_i32 = arith.constant 0 : i32
    %c0_i32_0 = arith.constant 0 : i32
    %c0_i32_1 = arith.constant 0 : i32
    return %c0_i32, %c0_i32_0 : i32, i32
  }
  func.func @transform_2(%arg0: i32) -> (i32, i32) {
    %c0_i32 = arith.constant 0 : i32
    %c0_i32_0 = arith.constant 0 : i32
    %c0_i32_1 = arith.constant 0 : i32
    return %c0_i32, %c0_i32_0 : i32, i32
  }
  func.func @transform_3(%arg0: i32) -> (i32, i32) {
    %c0_i32 = arith.constant 0 : i32
    %c0_i32_0 = arith.constant 0 : i32
    %c0_i32_1 = arith.constant 0 : i32
    return %c0_i32, %c0_i32_0 : i32, i32
  }
  func.func @transform_4(%arg0: i32) -> (i32, i32) {
    %c0_i32 = arith.constant 0 : i32
    %c0_i32_0 = arith.constant 0 : i32
    %c0_i32_1 = arith.constant 0 : i32
    return %c0_i32, %c0_i32_0 : i32, i32
  }
  func.func @transform_5(%arg0: i32) -> (i32, i32) {
    %c0_i32 = arith.constant 0 : i32
    %c0_i32_0 = arith.constant 0 : i32
    %c0_i32_1 = arith.constant 0 : i32
    return %c0_i32, %c0_i32_0 : i32, i32
  }
  func.func @transform_6(%arg0: i32) -> i32 {
    %c0_i32 = arith.constant 0 : i32
    %c0_i32_0 = arith.constant 0 : i32
    return %c0_i32 : i32
  }
  func.func @transform_7(%arg0: i32) -> (i32, i32) {
    %c0_i32 = arith.constant 0 : i32
    %c0_i32_0 = arith.constant 0 : i32
    return %arg0, %c0_i32 : i32, i32
  }
  func.func @transform_8(%arg0: i32) -> (i32, i32) {
    %c0_i32 = arith.constant 0 : i32
    %c0_i32_0 = arith.constant 0 : i32
    return %arg0, %c0_i32 : i32, i32
  }
}

</mosaic_0001>

<llo_original>
// kernel: tpu_custom_call.1
$region0: #{tpu_custom_call.1}
  #allocation0 [shape = 'u32[]', space=smem, size = 0x4, offset = 0x4, fixed_abs, tag = 'smem constant byte address 0x4 - core index']
  #allocation1 [shape = 'u32[144,128]{1,0:T(1,128)}', space=vmem, size = 0x12000, scoped, tag = 'internal scratch']
  #allocation2 [shape = 'f32[1]{0:T(128)S(6)}', space=smem, size = 0x200, scoped, tag = 'scoped memory for tpu_custom_call.1']
  %s0 = inlined_call_operand.vmem [shape: f32[8,4], index: 0, kind: input, shape index: {}]
  %s1 = inlined_call_operand.vmem [shape: f32[4,128], index: 1, kind: input, shape index: {}]
  %s2 = inlined_call_operand.vmem [shape: f32[1,4], index: 2, kind: input, shape index: {}]
  %s3 = inlined_call_operand.vmem [shape: f32[4,128], index: 3, kind: input, shape index: {}]
  %s4 = inlined_call_operand.vmem [shape: f32[4,128], index: 4, kind: input, shape index: {}]
  %s5 = inlined_call_operand.vmem [shape: f32[1,4], index: 5, kind: input, shape index: {}]
  %s6 = inlined_call_operand.<no memory space> [shape: f32[1], index: 6, kind: input, shape index: {}]
  %s7 = inlined_call_operand.vmem [shape: f32[8,1], index: 7, kind: output, shape index: {0}]
  %s8 = inlined_call_operand.vmem [shape: f32[8,4], index: 8, kind: output, shape index: {1}]
  %9 = xla_tuple %s7, %s8
  %s10 = sld [smem:[#allocation0]]
  $region46: #{tpu_custom_call.1} parent=0
    _
  %s12 = ssub.s32 1, %s10
  %s13 = scalar_select 0, %s12, %s10
  %14 = sst [smem:[#allocation2]] %s6
  // Predicated region
  $region2: #{tpu_custom_call.1} parent=0 // pred_check
    _
  $region3: #{tpu_custom_call.1} parent=0 // pred_check_branch
    %16 = sbr.rel (0) target = $region5
  $region4: #{tpu_custom_call.1} parent=0 // pred_region
    _
  $region5: #{tpu_custom_call.1} parent=0 // pred_fallthru
    _
  // Predicated region
  $region6: #{tpu_custom_call.1} parent=0 // pred_check
    _
  $region7: #{tpu_custom_call.1} parent=0 // pred_check_branch
    %18 = sbr.rel (0) target = $region9
  $region8: #{tpu_custom_call.1} parent=0 // pred_region
    _
  $region9: #{tpu_custom_call.1} parent=0 // pred_fallthru
    _
  // Predicated region
  $region10: #{tpu_custom_call.1} parent=0 // pred_check
    _
  $region11: #{tpu_custom_call.1} parent=0 // pred_check_branch
    %20 = sbr.rel (0) target = $region13
  $region12: #{tpu_custom_call.1} parent=0 // pred_region
    _
  $region13: #{tpu_custom_call.1} parent=0 // pred_fallthru
    _
  // Predicated region
  $region14: #{tpu_custom_call.1} parent=0 // pred_check
    _
  $region15: #{tpu_custom_call.1} parent=0 // pred_check_branch
    %22 = sbr.rel (0) target = $region17
  $region16: #{tpu_custom_call.1} parent=0 // pred_region
    _
  $region17: #{tpu_custom_call.1} parent=0 // pred_fallthru
    _
  // Predicated region
  $region18: #{tpu_custom_call.1} parent=0 // pred_check
    _
  $region19: #{tpu_custom_call.1} parent=0 // pred_check_branch
    %24 = sbr.rel (0) target = $region21
  $region20: #{tpu_custom_call.1} parent=0 // pred_region
    _
  $region21: #{tpu_custom_call.1} parent=0 // pred_fallthru
    _
  // Predicated region
  $region22: #{tpu_custom_call.1} parent=0 // pred_check
    _
  $region23: #{tpu_custom_call.1} parent=0 // pred_check_branch
    %26 = sbr.rel (0) target = $region25
  $region24: #{tpu_custom_call.1} parent=0 // pred_region
    _
  $region25: #{tpu_custom_call.1} parent=0 // pred_fallthru
    _
  // Predicated region
  $region26: #{tpu_custom_call.1} parent=0 // pred_check
    _
  $region27: #{tpu_custom_call.1} parent=0 // pred_check_branch
    %28 = sbr.rel (0) target = $region29
  $region28: #{tpu_custom_call.1} parent=0 // pred_region
    _
  $region29: #{tpu_custom_call.1} parent=0 // pred_fallthru
    _
  %v29 = vld [vmem:[%s1] sm:$0xf]
  %v30 = vmul.f32 %v29, 1.442695
  %v31 = vpow.pop %v30
  %v32 = vld [vmem:[%s3] sm:$0xf]
  %v33 = vmul.f32 %v32, 1.442695
  %v34 = vpow.pop %v33
  %v35 = vld [vmem:[%s0] sm:$0xff]
  %v36 = vld [vmem:[%s2] sm:$0x1]
  %v38 = vlaneseq
  %v39 = vshrl.u32 %v38, 7
  %v40 = vsub.s32 0, %v39
  %v41 = vrot.slane %v36, %v40
  %v43 = vsub.f32 %v35, %v41
  %v44 = vlaneseq
  %v45 = vshrl.u32 %v44, 7
  %v46 = vsub.s32 0, %v45
  %v47 = vrot.slane %v43, %v46
  %49 = vbcast.lane.b32.xlu0 %v47, 256
  %v50 = vpop.permute.xlu0 %49
  %v51 = vlaneseq
  %v52 = vshrl.u32 %v51, 7
  %v53 = vsub.s32 1, %v52
  %v54 = vrot.slane %v43, %v53
  %56 = vbcast.lane.b32.xlu0 %v54, 256
  %v57 = vpop.permute.xlu0 %56
  %v58 = vlaneseq
  %v59 = vshrl.u32 %v58, 7
  %v60 = vsub.s32 2, %v59
  %v61 = vrot.slane %v43, %v60
  %63 = vbcast.lane.b32.xlu0 %v61, 256
  %v64 = vpop.permute.xlu0 %63
  %v65 = vlaneseq
  %v66 = vshrl.u32 %v65, 7
  %v67 = vsub.s32 3, %v66
  %v68 = vrot.slane %v43, %v67
  %70 = vbcast.lane.b32.xlu0 %v68, 256
  %v71 = vpop.permute.xlu0 %70
  %v72 = vlaneseq
  %v73 = vshrl.u32 %v72, 7
  %v74 = vsub.s32 4, %v73
  %v75 = vrot.slane %v43, %v74
  %77 = vbcast.lane.b32.xlu0 %v75, 256
  %v78 = vpop.permute.xlu0 %77
  %v79 = vlaneseq
  %v80 = vshrl.u32 %v79, 7
  %v81 = vsub.s32 5, %v80
  %v82 = vrot.slane %v43, %v81
  %84 = vbcast.lane.b32.xlu0 %v82, 256
  %v85 = vpop.permute.xlu0 %84
  %v86 = vlaneseq
  %v87 = vshrl.u32 %v86, 7
  %v88 = vsub.s32 6, %v87
  %v89 = vrot.slane %v43, %v88
  %91 = vbcast.lane.b32.xlu0 %v89, 256
  %v92 = vpop.permute.xlu0 %91
  %v93 = vlaneseq
  %v94 = vshrl.u32 %v93, 7
  %v95 = vsub.s32 7, %v94
  %v96 = vrot.slane %v43, %v95
  %98 = vbcast.lane.b32.xlu0 %v96, 256
  %v99 = vpop.permute.xlu0 %98
  %v100 = vmul.f32 %v50, %v31
  %v101 = vmul.f32 %v57, %v31
  %v102 = vmul.f32 %v64, %v31
  %v103 = vmul.f32 %v71, %v31
  %v104 = vmul.f32 %v78, %v31
  %v105 = vmul.f32 %v85, %v31
  %v106 = vmul.f32 %v92, %v31
  %v107 = vmul.f32 %v99, %v31
  %v108 = vmax.f32 %v100, 0.0
  %v109 = vmax.f32 %v101, 0.0
  %v110 = vmax.f32 %v102, 0.0
  %v111 = vmax.f32 %v103, 0.0
  %v112 = vmax.f32 %v104, 0.0
  %v113 = vmax.f32 %v105, 0.0
  %v114 = vmax.f32 %v106, 0.0
  %v115 = vmax.f32 %v107, 0.0
  %v116 = vld [vmem:[%s4] sm:$0xf]
  %v117 = vsub.f32 %v108, %v116
  %v118 = vsub.f32 %v109, %v116
  %v119 = vsub.f32 %v110, %v116
  %v120 = vsub.f32 %v111, %v116
  %v121 = vsub.f32 %v112, %v116
  %v122 = vsub.f32 %v113, %v116
  %v123 = vsub.f32 %v114, %v116
  %v124 = vsub.f32 %v115, %v116
  %v125 = vmul.f32 %v117, %v34
  %v126 = vmul.f32 %v118, %v34
  %v127 = vmul.f32 %v119, %v34
  %v128 = vmul.f32 %v120, %v34
  %v129 = vmul.f32 %v121, %v34
  %v130 = vmul.f32 %v122, %v34
  %v131 = vmul.f32 %v123, %v34
  %v132 = vmul.f32 %v124, %v34
  %vm133 = vcmask 1043456
  %v134 = vsel %vm133, %v125, 0.0
  %135 = vadd.xlane.f32.xlu0 %v134
  %v136 = vpop.xlane.xlu0 %135
  %v137 = vsel %vm133, %v126, 0.0
  %138 = vadd.xlane.f32.xlu0 %v137
  %v139 = vpop.xlane.xlu0 %138
  %v140 = vsel %vm133, %v127, 0.0
  %141 = vadd.xlane.f32.xlu0 %v140
  %v142 = vpop.xlane.xlu0 %141
  %v143 = vsel %vm133, %v128, 0.0
  %144 = vadd.xlane.f32.xlu0 %v143
  %v145 = vpop.xlane.xlu0 %144
  %v146 = vsel %vm133, %v129, 0.0
  %147 = vadd.xlane.f32.xlu0 %v146
  %v148 = vpop.xlane.xlu0 %147
  %v149 = vsel %vm133, %v130, 0.0
  %150 = vadd.xlane.f32.xlu0 %v149
  %v151 = vpop.xlane.xlu0 %150
  %v152 = vsel %vm133, %v131, 0.0
  %153 = vadd.xlane.f32.xlu0 %v152
  %v154 = vpop.xlane.xlu0 %153
  %v155 = vsel %vm133, %v132, 0.0
  %156 = vadd.xlane.f32.xlu0 %v155
  %v157 = vpop.xlane.xlu0 %156
  %v158 = vmax.f32 %v136, 0.0
  %v159 = vmax.f32 %v139, 0.0
  %v160 = vmax.f32 %v142, 0.0
  %v161 = vmax.f32 %v145, 0.0
  %v162 = vmax.f32 %v148, 0.0
  %v163 = vmax.f32 %v151, 0.0
  %v164 = vmax.f32 %v154, 0.0
  %v165 = vmax.f32 %v157, 0.0
  %v166 = vld [vmem:[%s5] sm:$0x1]
  %v168 = vlaneseq
  %v169 = vshrl.u32 %v168, 7
  %v170 = vsub.s32 0, %v169
  %v171 = vrot.slane %v166, %v170
  %173 = vbcast.lane.b32.xlu0 %v171, 256
  %v174 = vpop.permute.xlu0 %173
  %v176 = vmul.f32 %v158, %v174
  %v177 = vmul.f32 %v159, %v174
  %v178 = vmul.f32 %v160, %v174
  %v179 = vmul.f32 %v161, %v174
  %v180 = vmul.f32 %v162, %v174
  %v181 = vmul.f32 %v163, %v174
  %v182 = vmul.f32 %v164, %v174
  %v183 = vmul.f32 %v165, %v174
  %192 = vset.pattern.permute.xlu0 0
  %193 = vperm.xlu0 %192, %v176
  %v194 = vpop.permute.xlu0 %193
  %195 = vset.pattern.permute.xlu0 0
  %196 = vperm.xlu0 %195, %v177
  %v197 = vpop.permute.xlu0 %196
  %198 = vset.pattern.permute.xlu0 0
  %199 = vperm.xlu0 %198, %v178
  %v200 = vpop.permute.xlu0 %199
  %201 = vset.pattern.permute.xlu0 0
  %202 = vperm.xlu0 %201, %v179
  %v203 = vpop.permute.xlu0 %202
  %204 = vset.pattern.permute.xlu0 0
  %205 = vperm.xlu0 %204, %v180
  %v206 = vpop.permute.xlu0 %205
  %207 = vset.pattern.permute.xlu0 0
  %208 = vperm.xlu0 %207, %v181
  %v209 = vpop.permute.xlu0 %208
  %210 = vset.pattern.permute.xlu0 0
  %211 = vperm.xlu0 %210, %v182
  %v212 = vpop.permute.xlu0 %211
  %213 = vset.pattern.permute.xlu0 0
  %214 = vperm.xlu0 %213, %v183
  %v215 = vpop.permute.xlu0 %214
  %v216 = vlaneseq
  %v217 = vand.u32 %v216, 127
  %v218 = vlaneseq
  %v219 = vshrl.u32 %v218, 7
  %v220 = vsub.s32 %v217, %v219
  %v221 = vrot.slane %v194, %v220
  %v222 = vlaneseq
  %v223 = vshrl.u32 %v222, 7
  %v224 = vsub.s32 %v217, %v223
  %v225 = vrot.slane %v197, %v224
  %v226 = vlaneseq
  %v227 = vshrl.u32 %v226, 7
  %v228 = vsub.s32 %v217, %v227
  %v229 = vrot.slane %v200, %v228
  %v230 = vlaneseq
  %v231 = vshrl.u32 %v230, 7
  %v232 = vsub.s32 %v217, %v231
  %v233 = vrot.slane %v203, %v232
  %v234 = vlaneseq
  %v235 = vshrl.u32 %v234, 7
  %v236 = vsub.s32 %v217, %v235
  %v237 = vrot.slane %v206, %v236
  %v238 = vlaneseq
  %v239 = vshrl.u32 %v238, 7
  %v240 = vsub.s32 %v217, %v239
  %v241 = vrot.slane %v209, %v240
  %v242 = vlaneseq
  %v243 = vshrl.u32 %v242, 7
  %v244 = vsub.s32 %v217, %v243
  %v245 = vrot.slane %v212, %v244
  %v246 = vlaneseq
  %v247 = vshrl.u32 %v246, 7
  %v248 = vsub.s32 %v217, %v247
  %v249 = vrot.slane %v215, %v248
  %vm250 = vcmask 1041409
  %v251 = vsel %vm250, %v225, %v221
  %vm252 = vcmask 1042434
  %v253 = vsel %vm252, %v229, %v251
  %vm254 = vcmask 1043459
  %v255 = vsel %vm254, %v233, %v253
  %vm256 = vcmask 1044484
  %v257 = vsel %vm256, %v237, %v255
  %vm258 = vcmask 1045509
  %v259 = vsel %vm258, %v241, %v257
  %vm260 = vcmask 1046534
  %v261 = vsel %vm260, %v245, %v259
  %vm262 = vcmask 1047559
  %v263 = vsel %vm262, %v249, %v261
  %vm265 = vcmask 31744
  %266 = vst.msk [vmem:[%s8] sm:$0xff] %vm265, %v263
  %v267 = vsel %vm265, %v263, 0.0
  %268 = vadd.xlane.f32.xlu0 %v267
  %v269 = vpop.xlane.xlu0 %268
  %s270 = sld [smem:[#allocation2]]
  %v271 = vstv %s270
  %v272 = vadd.f32 %v269, %v271
  %vm273 = vcmask 7168
  %274 = vst.msk [vmem:[%s7] sm:$0xff] %vm273, %v272
  // Predicated region
  $region30: #{tpu_custom_call.1} parent=0 // pred_check
    _
  $region31: #{tpu_custom_call.1} parent=0 // pred_check_branch
    %276 = sbr.rel (0) target = $region33
  $region32: #{tpu_custom_call.1} parent=0 // pred_region
    _
  $region33: #{tpu_custom_call.1} parent=0 // pred_fallthru
    _
  // Predicated region
  $region34: #{tpu_custom_call.1} parent=0 // pred_check
    _
  $region35: #{tpu_custom_call.1} parent=0 // pred_check_branch
    %278 = sbr.rel (0) target = $region37
  $region36: #{tpu_custom_call.1} parent=0 // pred_region
    _
  $region37: #{tpu_custom_call.1} parent=0 // pred_fallthru
    _
  // Predicated region
  $region38: #{tpu_custom_call.1} parent=0 // pred_check
    _
  $region39: #{tpu_custom_call.1} parent=0 // pred_check_branch
    %280 = sbr.rel (0) target = $region41
  $region40: #{tpu_custom_call.1} parent=0 // pred_region
    _
  $region41: #{tpu_custom_call.1} parent=0 // pred_fallthru
    _
  // Predicated region
  $region42: #{tpu_custom_call.1} parent=0 // pred_check
    _
  $region43: #{tpu_custom_call.1} parent=0 // pred_check_branch
    %282 = sbr.rel (0) target = $region45
  $region44: #{tpu_custom_call.1} parent=0 // pred_region
    _
  $region45: #{tpu_custom_call.1} parent=0 // pred_fallthru
    _

</llo_original>
